<compile_context>
chip_gen: v6e
topology: v6e:2x2x1
jax: 0.10.0
libtpu: 0.0.40
codegen_flags: <defaults>
</compile_context>

<pallas_src>
import math

import jax
import jax.numpy as jnp
from jax.experimental import pallas as pl
from jax.experimental.pallas import tpu as pltpu


def _pe_add_kernel(x_ref, o_ref, pe_ref):
    # x_ref / o_ref tile: (1, TN, D); pe_ref scratch: (TN, D) float32.
    seq_tile = pl.program_id(0)
    tn, d = pe_ref.shape

    @pl.when(pl.program_id(1) == 0)  # batch is the inner ("arbitrary") grid axis
    def _compute_pe():
        # Absolute position of each row of this sequence tile: (TN, 1) f32.
        pos = (seq_tile * tn
               + jax.lax.broadcasted_iota(jnp.int32, (tn, 1), 0)).astype(jnp.float32)
        # Column index: (1, D).  Transcendentals are evaluated on this single
        # row and broadcast, instead of over the whole (TN, D) tile.
        col = jax.lax.broadcasted_iota(jnp.int32, (1, d), 1)
        even = (col & ~1).astype(jnp.float32)                   # 2 * floor(j / 2)
        inv_freq = jnp.exp(even * (-math.log(10000.0) / d))     # (1, D)
        # Odd columns get a +pi/2 phase so a single sin yields cos there.
        phase = (col & 1).astype(jnp.float32) * (math.pi / 2.0)  # (1, D)
        pe_ref[...] = jnp.sin(pos * inv_freq + phase)            # (TN, D)

    # Accumulate in f32, cast back to the output dtype.
    xf = x_ref[...].astype(jnp.float32)
    o_ref[...] = (xf + pe_ref[...][None, :, :]).astype(o_ref.dtype)


def _choose_tile_n(n, d, itemsize, target_bytes=2 * 1024 * 1024):
    """Sequence-tile length: ~2 MiB per block per stream, multiple of 8 rows."""
    tn = target_bytes // max(1, d * itemsize)
    if tn >= n:
        return n                      # whole sequence fits in one block (full-dim is legal)
    tn = max(8, (tn // 8) * 8)        # sublane-aligned
    return min(tn, n)


def positional_encoding(x, *, max_len=5000, tile_n=None):
    """x: (B, N, D) -> x + PE[:N, :D], same shape/dtype as x."""
    b, n, d = x.shape
    assert d % 2 == 0, "d_model must be even (matches the PyTorch reference)"
    assert n <= max_len, "sequence length exceeds max_len"

    tn = tile_n if tile_n is not None else _choose_tile_n(n, d, x.dtype.itemsize)
    n_tiles = pl.cdiv(n, tn)

    return pl.pallas_call(
        _pe_add_kernel,
        out_shape=jax.ShapeDtypeStruct((b, n, d), x.dtype),
        grid=(n_tiles, b),  # seq tiles outer (parallel), batch inner (arbitrary)
        in_specs=[pl.BlockSpec((1, tn, d), lambda i, bb: (bb, i, 0))],
        out_specs=pl.BlockSpec((1, tn, d), lambda i, bb: (bb, i, 0)),
        scratch_shapes=[pltpu.VMEM((tn, d), jnp.float32)],
        compiler_params=pltpu.CompilerParams(
            dimension_semantics=("parallel", "arbitrary")),
    )(x)


def _reference_pe(n, d, dtype=jnp.float32):
    # Plain-JAX reference identical to the PyTorch buffer construction.
    position = jnp.arange(n, dtype=jnp.float32)[:, None]
    div_term = jnp.exp(jnp.arange(0, d, 2, dtype=jnp.float32) * (-math.log(10000.0) / d))
    pe = jnp.zeros((n, d), dtype=jnp.float32)
    pe = pe.at[:, 0::2].set(jnp.sin(position * div_term))
    pe = pe.at[:, 1::2].set(jnp.cos(position * div_term))
    return pe.astype(dtype)


if __name__ == "__main__":
    key = jax.random.PRNGKey(0)

    # Case 1: shapes implied by the module (batch=2, seq=8, hidden=32); single tile.
    b, n, d = 2, 8, 32
    x1 = jax.random.normal(key, (b, n, d), dtype=jnp.float32)
    out1 = jax.block_until_ready(positional_encoding(x1))
    exp1 = x1 + _reference_pe(n, d)[None, :, :]
    assert out1.shape == x1.shape and out1.dtype == x1.dtype
    assert jnp.allclose(out1, exp1, atol=1e-5, rtol=1e-5), "mismatch vs reference (case 1)"

    # Case 2: multi-tile grid with a ragged last tile (N=20, tile_n=8 -> 3 tiles),
    # exercising the cached PE scratch and absolute-position offsets.
    b2, n2, d2 = 3, 20, 128
    x2 = jax.random.normal(jax.random.PRNGKey(0), (b2, n2, d2), dtype=jnp.float32)
    out2 = jax.block_until_ready(positional_encoding(x2, tile_n=8))
    exp2 = x2 + _reference_pe(n2, d2)[None, :, :]
    assert jnp.allclose(out2, exp2, atol=1e-5, rtol=1e-5), "mismatch vs reference (case 2)"

    print("KERNEL_OK")
</pallas_src>

<mosaic_0001>
module attributes {stable_mosaic.version = 11 : i64} {
  func.func @_pe_add_kernel(%arg0: i32, %arg1: i32, %arg2: memref<1x8x32xf32, #tpu.memory_space<vmem>>, %arg3: memref<1x8x32xf32, #tpu.memory_space<vmem>>, %arg4: memref<8x32xf32, #tpu.memory_space<vmem>>) attributes {dimension_semantics = [#tpu.dimension_semantics<parallel>, #tpu.dimension_semantics<arbitrary>], iteration_bounds = array<i64: 1, 2>, scalar_prefetch = 0 : i64, scratch_operands = 1 : i64, tpu.core_type = #tpu.core_type<tc>, window_params = [{transform_indices = @transform_0, window_bounds = array<i64: 1, 8, 32>}, {transform_indices = @transform_1, window_bounds = array<i64: 1, 8, 32>}]} {
    %c0_i32 = arith.constant 0 : i32
    %0 = arith.cmpi eq, %arg1, %c0_i32 : i32
    %1 = arith.extui %0 : i1 to i32
    %c0_i32_0 = arith.constant 0 : i32
    %2 = arith.cmpi ne, %1, %c0_i32_0 : i32
    scf.if %2 {
      %c8_i32 = arith.constant 8 : i32
      %8 = arith.muli %arg0, %c8_i32 : i32
      %9 = tpu.iota {dimensions = array<i32: 0>} : vector<8x1xi32>
      %10 = vector.broadcast %8 : i32 to vector<8x1xi32>
      %11 = arith.addi %10, %9 : vector<8x1xi32>
      %12 = arith.sitofp %11 : vector<8x1xi32> to vector<8x1xf32>
      %13 = tpu.iota {dimensions = array<i32: 1>} : vector<1x32xi32>
      %c-2_i32 = arith.constant -2 : i32
      %14 = vector.broadcast %c-2_i32 : i32 to vector<1x32xi32>
      %15 = arith.andi %13, %14 : vector<1x32xi32>
      %16 = arith.sitofp %15 : vector<1x32xi32> to vector<1x32xf32>
      %cst = arith.constant -0.287823141 : f32
      %17 = vector.broadcast %cst : f32 to vector<1x32xf32>
      %18 = arith.mulf %16, %17 : vector<1x32xf32>
      %19 = math.exp %18 : vector<1x32xf32>
      %c1_i32 = arith.constant 1 : i32
      %20 = vector.broadcast %c1_i32 : i32 to vector<1x32xi32>
      %21 = arith.andi %13, %20 : vector<1x32xi32>
      %22 = arith.sitofp %21 : vector<1x32xi32> to vector<1x32xf32>
      %cst_8 = arith.constant 1.57079637 : f32
      %23 = vector.broadcast %cst_8 : f32 to vector<1x32xf32>
      %24 = arith.mulf %22, %23 : vector<1x32xf32>
      %25 = vector.broadcast %12 : vector<8x1xf32> to vector<8x32xf32>
      %26 = vector.broadcast %19 : vector<1x32xf32> to vector<8x32xf32>
      %27 = arith.mulf %25, %26 : vector<8x32xf32>
      %28 = vector.broadcast %24 : vector<1x32xf32> to vector<8x32xf32>
      %29 = arith.addf %27, %28 : vector<8x32xf32>
      %30 = math.sin %29 : vector<8x32xf32>
      %c0_9 = arith.constant 0 : index
      %c0_10 = arith.constant 0 : index
      %31 = vector.load %arg4[%c0_9, %c0_10] : memref<8x32xf32, #tpu.memory_space<vmem>>, vector<8x32xf32>
      tpu.vector_store %arg4[%c0_9, %c0_10], %30 {strides = array<i32>} : memref<8x32xf32, #tpu.memory_space<vmem>>, vector<8x32xf32>,
    } else {
    }
    %c0 = arith.constant 0 : index
    %c0_1 = arith.constant 0 : index
    %c0_2 = arith.constant 0 : index
    %3 = vector.load %arg2[%c0, %c0_1, %c0_2] : memref<1x8x32xf32, #tpu.memory_space<vmem>>, vector<1x8x32xf32>
    %c0_3 = arith.constant 0 : index
    %c0_4 = arith.constant 0 : index
    %4 = vector.load %arg4[%c0_3, %c0_4] : memref<8x32xf32, #tpu.memory_space<vmem>>, vector<8x32xf32>
    %5 = vector.shape_cast %4 : vector<8x32xf32> to vector<1x8x32xf32>
    %6 = arith.addf %3, %5 : vector<1x8x32xf32>
    %c0_5 = arith.constant 0 : index
    %c0_6 = arith.constant 0 : index
    %c0_7 = arith.constant 0 : index
    %7 = vector.load %arg3[%c0_5, %c0_6, %c0_7] : memref<1x8x32xf32, #tpu.memory_space<vmem>>, vector<1x8x32xf32>
    tpu.vector_store %arg3[%c0_5, %c0_6, %c0_7], %6 {strides = array<i32>} : memref<1x8x32xf32, #tpu.memory_space<vmem>>, vector<1x8x32xf32>,
    return
  }
  func.func @transform_0(%arg0: i32, %arg1: i32) -> (i32, i32, i32) {
    %c0_i32 = arith.constant 0 : i32
    %c0_i32_0 = arith.constant 0 : i32
    return %arg1, %arg0, %c0_i32 : i32, i32, i32
  }
  func.func @transform_1(%arg0: i32, %arg1: i32) -> (i32, i32, i32) {
    %c0_i32 = arith.constant 0 : i32
    %c0_i32_0 = arith.constant 0 : i32
    return %arg1, %arg0, %c0_i32 : i32, i32, i32
  }
}

</mosaic_0001>

<llo_original>
// kernel: tpu_custom_call.1
$region0: #{tpu_custom_call.1}
  #allocation0 [shape = 'u32[]', space=smem, size = 0x4, offset = 0x4, fixed_abs, tag = 'smem constant byte address 0x4 - core index']
  #allocation1 [shape = 'u32[144,128]{1,0:T(1,128)}', space=vmem, size = 0x12000, scoped, tag = 'internal scratch']
  #allocation2 [shape = 'f32[8,32]{1,0:T(8,128)}', space=vmem, size = 0x1000, scoped, tag = 'scratch operand']
  %s0 = inlined_call_operand.hbm [shape: f32[2,8,32], index: 0, kind: input, shape index: {}]
  %s1 = inlined_call_operand.hbm [shape: f32[2,8,32], index: 1, kind: output, shape index: {}]
  %s2 = sld [smem:[#allocation0]]
  $region45: #{tpu_custom_call.1} parent=0
    _
  %s4 = ssub.s32 1, %s2
  %s5 = scalar_select 0, %s4, %s2
  $region1: #{tpu_custom_call.1} parent=0
    #allocation3 [shape = 'u8[8192]{0}', space=vmem, size = 0x2000, scoped, tag = 'input window, operand 0']
    #allocation4 [shape = 's32[2]{0}', space=sflag, size = 0x8, scoped, tag = 'scoped memory for tpu_custom_call.1']
    #allocation5 [shape = 's32[2]{0}', space=sflag, size = 0x8, scoped, tag = 'scoped memory for tpu_custom_call.1']
    #allocation6 [shape = 'u8[8192]{0}', space=vmem, size = 0x2000, scoped, tag = 'output window, operand 0']
    %6 = vsyncpa [#allocation4], 0
    %s7 = scalar_lea.sflag [#allocation4], 1
    %8 = vsyncpa %s7, 0
    %9 = vsyncpa [#allocation5], 0
    %s10 = scalar_lea.sflag [#allocation5], 1
    %11 = vsyncpa %s10, 0
    loop: start=0, step=1, limit=4
    $region2: #{tpu_custom_call.1} parent=1 // loop_pre_header
      _
    $region3: #{tpu_custom_call.1} parent=1 // loop_header
      %s13 = sphi 0, %s17
      %p14 = scmp.ge.s32.totalorder %s13, 4
      %s20 = sphi 0, %s32
      %s21 = sphi 0, %s28
      %s22 = sphi 0, %s20
      %s23 = sphi 0, %s21
      %s24 = sphi 0, %s22
      %s25 = sphi 0, %s23
      %s37 = sphi 0, %s39
      %s40 = sphi 0, %s37
      %s41 = sphi 0, %s40
      %s57 = sphi 0, %s41
      %s65 = sphi 0, %s67
      %s68 = sphi 0, %s65
      %s69 = sphi 0, %s68
      %s85 = sphi 0, %s69
    $region4: #{tpu_custom_call.1} parent=1 // loop_header_branch
      %16 = sbr.rel (%p14) target = $region8
    $region5: #{tpu_custom_call.1} parent=1 // loop_body
      %s18 = ssub.s32 %s13, 1
      %s19 = ssub.s32 %s13, 2
      %s26 = sadd.s32 1, %s21
      %p27 = scmp.ge.s32.totalorder %s26, 2
      %s28 = scalar_select %p27, 0, %s26
      %s29 = sadd.s32 1, %s20
      %s30 = scalar_select %p27, %s29, %s20
      %p31 = scmp.ge.s32.totalorder %s30, 1
      %s32 = scalar_select %p31, 0, %s30
      %s33 = ssub.s32 %s21, %s28
      %s34 = ssub.s32 %s20, %s32
      %s35 = sor.u32 %s33, %s34
      %p36 = scmp.eq.s32.totalorder %s35, 0
      %s38 = sadd.s32 %s37, 1
      %s39 = scalar_select %p36, %s37, %s38
      %p42 = pneg %p36
      %p43 = scmp.eq.s32.totalorder %s13, 1
      %p44 = por %p42, %p43
      %p45 = scmp.ne.s32.totalorder %s37, %s40
      %p46 = scmp.eq.s32.totalorder %s13, 0
      %p47 = por %p45, %p46
      %p48 = scmp.ne.s32.totalorder %s37, %s40
      %p49 = scmp.eq.s32.totalorder %s18, 1
      %p50 = por %p48, %p49
      %p51 = scmp.ne.s32.totalorder %s40, %s41
      %p52 = scmp.eq.s32.totalorder %s18, 0
      %p53 = por %p51, %p52
      %p54 = scmp.ne.s32.totalorder %s40, %s41
      %p55 = scmp.eq.s32.totalorder %s19, 1
      %p56 = por %p54, %p55
      %p58 = scmp.ne.s32.totalorder %s41, %s57
      %p59 = scmp.eq.s32.totalorder %s19, 0
      %p60 = por %p58, %p59
      %s61 = ssub.s32 %s21, %s28
      %s62 = ssub.s32 %s20, %s32
      %s63 = sor.u32 %s61, %s62
      %p64 = scmp.eq.s32.totalorder %s63, 0
      %s66 = sadd.s32 %s65, 1
      %s67 = scalar_select %p64, %s65, %s66
      %p70 = pneg %p64
      %p71 = scmp.eq.s32.totalorder %s13, 1
      %p72 = por %p70, %p71
      %p73 = scmp.ne.s32.totalorder %s65, %s68
      %p74 = scmp.eq.s32.totalorder %s13, 0
      %p75 = por %p73, %p74
      %p76 = scmp.ne.s32.totalorder %s65, %s68
      %p77 = scmp.eq.s32.totalorder %s18, 1
      %p78 = por %p76, %p77
      %p79 = scmp.ne.s32.totalorder %s68, %s69
      %p80 = scmp.eq.s32.totalorder %s18, 0
      %p81 = por %p79, %p80
      %p82 = scmp.ne.s32.totalorder %s68, %s69
      %p83 = scmp.eq.s32.totalorder %s19, 1
      %p84 = por %p82, %p83
      %p86 = scmp.ne.s32.totalorder %s69, %s85
      %p87 = scmp.eq.s32.totalorder %s19, 0
      %p88 = por %p86, %p87
      %p89 = scmp.le.s32.totalorder 1, %s13
      %p90 = scmp.lt.s32.totalorder %s13, 3
      %p91 = pnand %p89, %p90
      %p92 = pneg %p91
      // Predicated region
      $region9: #{tpu_custom_call.1} parent=5 // pred_check
        _
      $region10: #{tpu_custom_call.1} parent=5 // pred_check_branch
        %94 = sbr.rel (%p91) target = $region12
      $region11: #{tpu_custom_call.1} parent=5 // pred_region
        %s95 = ssub.s32 %s13, 1
      $region12: #{tpu_custom_call.1} parent=5 // pred_fallthru
        _
      %p96 = scmp.lt.s32.totalorder %s13, 2
      // Predicated region
      $region13: #{tpu_custom_call.1} parent=5 // pred_check
        %p97 = pneg %p96
      $region14: #{tpu_custom_call.1} parent=5 // pred_check_branch
        %99 = sbr.rel (%p97) target = $region16
      $region15: #{tpu_custom_call.1} parent=5 // pred_region
        // Predicated region
        $region17: #{tpu_custom_call.1} parent=15 // pred_check
          %p100 = pneg %p47
        $region18: #{tpu_custom_call.1} parent=15 // pred_check_branch
          %102 = sbr.rel (%p100) target = $region20
        $region19: #{tpu_custom_call.1} parent=15 // pred_region
          %s103 = sand.u32 %s37, 1
          %s104 = scalar_lea.sflag [#allocation4], %s103
          %s105 = sand.u32 %s37, 1
          %s106 = smul.addr %s105, 8
          %s107 = scalar_lea.vmem [#allocation3], %s106
          %s109 = ssub.s32 128, 128
          %110 = vsyncadd %s104, %s109
          %s111 = sadd.s32 %s20, %s21
          %s112 = smul.addr %s111, 128
          %s113 = scalar_lea.hbm %s0, %s112
          %s115 = sshll.u32 %s107, 4
          %s116 = int_to_ptr.vmem [resolvable:$true] %s115
          %118 = dma.hbm_to_vmem [thread:$0]  %s113, 128, %s116, %s104
        $region20: #{tpu_custom_call.1} parent=15 // pred_fallthru
          _
      $region16: #{tpu_custom_call.1} parent=5 // pred_fallthru
        _
      %p119 = scmp.le.s32.totalorder 1, %s13
      %p120 = scmp.lt.s32.totalorder %s13, 3
      %p121 = pnand %p119, %p120
      %p122 = pneg %p121
      // Predicated region
      $region21: #{tpu_custom_call.1} parent=5 // pred_check
        _
      $region22: #{tpu_custom_call.1} parent=5 // pred_check_branch
        %124 = sbr.rel (%p121) target = $region24
      $region23: #{tpu_custom_call.1} parent=5 // pred_region
        %s125 = ssub.s32 %s13, 1
        %s126 = sand.u32 %s40, 1
        %s127 = scalar_lea.sflag [#allocation4], %s126
        %s128 = sand.u32 %s40, 1
        %s129 = smul.addr %s128, 8
        %s130 = scalar_lea.vmem [#allocation3], %s129
        // Predicated region
        $region25: #{tpu_custom_call.1} parent=23 // pred_check
          %p131 = pneg %p53
        $region26: #{tpu_custom_call.1} parent=23 // pred_check_branch
          %133 = sbr.rel (%p131) target = $region28
        $region27: #{tpu_custom_call.1} parent=23 // pred_region
          %134 = dma.done %s127, 128
        $region28: #{tpu_custom_call.1} parent=23 // pred_fallthru
          _
        %s135 = sand.u32 %s40, 1
        %s136 = scalar_lea.sflag [#allocation4], %s135
        %s137 = sand.u32 %s40, 1
        %s138 = smul.addr %s137, 8
        %s139 = scalar_lea.vmem [#allocation3], %s138
        %p140 = pneg %p53
        %p141 = pneg %p50
        %p142 = pneg %p81
        %p143 = pneg %p78
        %s144 = sand.u32 %s68, 1
        %s145 = scalar_lea.sflag [#allocation5], %s144
        %s146 = sand.u32 %s68, 1
        %s147 = smul.addr %s146, 8
        %s148 = scalar_lea.vmem [#allocation6], %s147
        %p149 = scmp.eq.s32.totalorder %s23, 0
        // Predicated region
        $region29: #{tpu_custom_call.1} parent=23 // pred_check
          %p150 = pneg %p149
        $region30: #{tpu_custom_call.1} parent=23 // pred_check_branch
          %152 = sbr.rel (%p150) target = $region32
        $region31: #{tpu_custom_call.1} parent=23 // pred_region
          %s153 = smul.u32 %s22, 8
          %v154 = vlaneseq
          %v155 = vshrl.u32 %v154, 7
          %v156 = vstv %s153
          %v157 = vadd.s32 %v156, %v155
          %v158 = vcvt.s32.f32 %v157
          %v159 = vlaneseq
          %v160 = vand.u32 %v159, 127
          %v161 = vand.u32 %v160, 4294967294
          %v162 = vcvt.s32.f32 %v161
          %v163 = vmul.f32 %v162, -0.28782314
          %v164 = vmul.f32 %v163, 1.442695
          %v165 = vpow.pop %v164
          %v166 = vand.u32 %v160, 1
          %v167 = vcvt.s32.f32 %v166
          %v168 = vmul.f32 %v167, 1.5707964
          %v169 = vmul.f32 %v158, %v165
          %v170 = vadd.f32 %v169, %v168
          %v171 = vand.u32 2147483647, %v170
          %vm172 = vcmp.le.f32.partialorder %v171, 0.7853982
          %vm173 = vcmp.lt.s32.totalorder %v170, 0
          %v174 = vand.u32 %v170, 2139095040
          %v175 = vshrl.u32 %v174, 23
          %v176 = vsub.s32 %v175, 127
          %v177 = vand.u32 2147483647, %v170
          %v178 = vand.u32 %v177, 8388607
          %v179 = vor.u32 %v178, 8388608
          %v180 = vsub.s32 0, %v179
          %v181 = vadd.s32 %v176, 1
          %vm182 = vcmp.gt.s32.totalorder %v181, 0
          %v183 = vsel %vm182, %v181, 0
          %v184 = vshrl.u32 %v183, 5
          %v185 = vand.u32 %v183, 31
          %v186 = vsub.s32 32, %v185
          %v187 = vshrl.u32 683565275, %v186
          %v188 = vshll.u32 683565275, %v185
          %v189 = vshrl.u32 2475754826, %v186
          %v190 = vor.u32 %v188, %v189
          %v191 = vshll.u32 2475754826, %v185
          %v192 = vshrl.u32 2131351028, %v186
          %v193 = vor.u32 %v191, %v192
          %v194 = vshll.u32 2131351028, %v185
          %v195 = vshrl.u32 2102212464, %v186
          %v196 = vor.u32 %v194, %v195
          %v197 = vshll.u32 2102212464, %v185
          %v198 = vshrl.u32 920167782, %v186
          %v199 = vor.u32 %v197, %v198
          %v200 = vshll.u32 920167782, %v185
          %v201 = vshrl.u32 1326507024, %v186
          %v202 = vor.u32 %v200, %v201
          %vm203 = vcmp.lt.s32.totalorder %v184, 1
          %vm204 = vcmp.lt.s32.totalorder %v184, 2
          %vm205 = vcmp.lt.s32.totalorder %v184, 3
          %vm206 = vcmp.lt.s32.totalorder %v184, 4
          %v207 = vsel %vm203, %v187, %v190
          %v208 = vsel %vm206, %v196, 2102212464
          %v209 = vsel %vm205, %v193, %v208
          %v210 = vsel %vm204, %v207, %v209
          %v211 = vsel %vm203, %v190, %v193
          %v212 = vsel %vm206, %v199, 920167782
          %v213 = vsel %vm205, %v196, %v212
          %v214 = vsel %vm204, %v211, %v213
          %v215 = vsel %vm203, %v193, %v196
          %v216 = vsel %vm206, %v202, 1326507024
          %v217 = vsel %vm205, %v199, %v216
          %v218 = vsel %vm204, %v215, %v217
          %v219 = vshll.u32 %v179, 8
          %v220 = vmul.u32.u64.compose %v219, %v218
          %v221 = vextract.low.u32 %v220
          %v222 = vextract.high.u32 %v220
          %v223 = vmul.u32.u64.compose %v219, %v214
          %v224 = vextract.low.u32 %v223
          %v225 = vextract.high.u32 %v223
          %v226 = vmul.u32 %v219, %v210
          %v227 = vadd.s32 %v222, %v224
          %vm228 = vc.u32 %v222, %v224
          %v229 = vadd.s32 %v225, 1
          %v230 = vsel %vm228, %v229, %v225
          %v231 = vadd.s32 %v226, %v230
          %v232 = vadd.s32 %v231, 536870912
          %v233 = vshrl.u32 %v232, 30
          %v234 = vshll.u32 %v233, 30
          %v235 = vsub.s32 %v231, %v234
          %vm236 = vcmp.lt.s32.totalorder %v235, 0
          %v237 = vsub.s32 0, %v235
          %v238 = vsel %vm236, %v237, %v235
          %v239 = vclz %v238
          %v240 = vsub.s32 %v239, 2
          %vm241 = vcmp.gt.s32.totalorder 0, %v240
          %v242 = vsel %vm241, 0, %v240
          %v243 = vsub.s32 32, %v242
          %v244 = vshll.u32 %v235, %v242
          %v245 = vshrl.u32 %v227, %v243
          %v246 = vor.u32 %v244, %v245
          %v247 = vsub.s32 4294967266, %v242
          %v248 = vadd.s32 %v247, 127
          %v249 = vshll.u32 %v248, 23
          %v250 = vor.u32 4788187, %v249
          %v251 = vand.u32 2147483647, %v250
          %v253 = vcvt.s32.f32 %v246
          %v254 = vmul.f32 %v253, %v251
          %v255 = vxor.u32 %v254, 2147483648
          %v256 = vsel %vm173, %v255, %v254
          %v257 = vsub.s32 4, %v233
          %v258 = vsel %vm173, %v257, %v233
          %v259 = vsel %vm172, %v170, %v256
          %v260 = vsel %vm172, 0, %v258
          %v261 = vcosq.f32.pop %v259
          %v262 = vsinq.f32.pop %v259
          %vm263 = vweird.f32 %v170
          %v264 = vadd.s32 %v260, 3
          %v265 = vand.u32 %v264, 3
          %vm266 = vcmp.lt.s32.totalorder %v265, 2
          %vm267 = vcmp.eq.s32.totalorder %v265, 0
          %v268 = vxor.u32 %v262, 2147483648
          %v269 = vsel %vm267, %v261, %v268
          %vm270 = vcmp.eq.s32.totalorder %v265, 2
          %v271 = vxor.u32 %v261, 2147483648
          %v272 = vsel %vm270, %v271, %v262
          %v273 = vsel %vm266, %v269, %v272
          %v274 = vsel %vm263, nan, %v273
          %vm275 = vcmask 261120
          %276 = vst.msk [vmem:[#allocation2] sm:$0xff] %vm275, %v274
        $region32: #{tpu_custom_call.1} parent=23 // pred_fallthru
          _
        %v277 = vld [vmem:[%s130] sm:$0xff]
        %v278 = vld [vmem:[#allocation2] sm:$0xff]
        %v279 = vadd.f32 %v277, %v278
        %vm280 = vcmask 261120
        %281 = vst.msk [vmem:[%s148] sm:$0xff] %vm280, %v279
        %s282 = sand.u32 %s68, 1
        %s283 = scalar_lea.sflag [#allocation5], %s282
        %s284 = sand.u32 %s68, 1
        %s285 = smul.addr %s284, 8
        %s286 = scalar_lea.vmem [#allocation6], %s285
        // Predicated region
        $region33: #{tpu_custom_call.1} parent=23 // pred_check
          %p287 = pneg %p78
        $region34: #{tpu_custom_call.1} parent=23 // pred_check_branch
          %289 = sbr.rel (%p287) target = $region36
        $region35: #{tpu_custom_call.1} parent=23 // pred_region
          %s291 = ssub.s32 128, 128
          %292 = vsyncadd %s283, %s291
          %s293 = sadd.s32 %s22, %s23
          %s294 = smul.addr %s293, 128
          %s295 = scalar_lea.hbm %s1, %s294
          %s297 = sshll.u32 %s286, 4
          %s298 = int_to_ptr.vmem [resolvable:$true] %s297
          %300 = dma.vmem_to_hbm [thread:$0]  %s298, 128, %s295, %s283
        $region36: #{tpu_custom_call.1} parent=23 // pred_fallthru
          _
      $region24: #{tpu_custom_call.1} parent=5 // pred_fallthru
        _
      %p301 = scmp.le.s32.totalorder 2, %s13
      // Predicated region
      $region37: #{tpu_custom_call.1} parent=5 // pred_check
        %p302 = pneg %p301
      $region38: #{tpu_custom_call.1} parent=5 // pred_check_branch
        %304 = sbr.rel (%p302) target = $region40
      $region39: #{tpu_custom_call.1} parent=5 // pred_region
        %s305 = ssub.s32 %s13, 2
        // Predicated region
        $region41: #{tpu_custom_call.1} parent=39 // pred_check
          %p306 = pneg %p84
        $region42: #{tpu_custom_call.1} parent=39 // pred_check_branch
          %308 = sbr.rel (%p306) target = $region44
        $region43: #{tpu_custom_call.1} parent=39 // pred_region
          %s309 = sand.u32 %s69, 1
          %s310 = scalar_lea.sflag [#allocation5], %s309
          %s311 = sand.u32 %s69, 1
          %s312 = smul.addr %s311, 8
          %s313 = scalar_lea.vmem [#allocation6], %s312
          %314 = dma.done %s310, 128
        $region44: #{tpu_custom_call.1} parent=39 // pred_fallthru
          _
      $region40: #{tpu_custom_call.1} parent=5 // pred_fallthru
        _
    $region6: #{tpu_custom_call.1} parent=1 // loop_footer
      %s17 = sadd.s32 1, %s13
    $region7: #{tpu_custom_call.1} parent=1 // loop_footer_branch
      %12 = sbr.rel target = $region3
    $region8: #{tpu_custom_call.1} parent=1 // loop_exit
      _
    %315 = vsyncpa [#allocation4], 1
    %s316 = scalar_lea.sflag [#allocation4], 1
    %317 = vsyncpa %s316, 1
    %318 = vsyncpa [#allocation5], 1
    %s319 = scalar_lea.sflag [#allocation5], 1
    %320 = vsyncpa %s319, 1

</llo_original>
